<compile_context>
chip_gen: v7x
topology: tpu7x:2x2x1
jax: 0.10.0
libtpu: 0.0.40
codegen_flags: <defaults>
</compile_context>

<pallas_src>
import jax
import jax.numpy as jnp
from jax.experimental import pallas as pl
from jax.experimental.pallas import tpu as pltpu


_LANE_TILE = 128      # lane-dense time tile (last dim in multiples of 128)
_VPU_CIN_MAX = 8      # contraction depths <= this use unrolled VPU FMA, not the MXU


# ----------------------------------------------------------------------------
# Minimal JAX "modules" mirroring the nn.Sequential children used in the spec.
# (Conv1d with kernel_size=1 and simple activations are elementwise in T.)
# ----------------------------------------------------------------------------
class PointwiseConv1d:
    """nn.Conv1d(C_in, C_out, kernel_size=1) over [C, T] (elementwise in time)."""

    def __init__(self, weight, bias=None):
        # weight: (C_out, C_in, 1) like nn.Conv1d.weight; bias: (C_out,) or None.
        weight = jnp.asarray(weight, jnp.float32)
        assert weight.ndim == 3 and weight.shape[-1] == 1
        # Hoisted once (perf feedback): kernel consumes (C_out, C_in) + (C_out, 1).
        self.weight_2d = weight[..., 0]
        c_out = self.weight_2d.shape[0]
        self.bias_col = (
            jnp.zeros((c_out, 1), jnp.float32)
            if bias is None
            else jnp.asarray(bias, jnp.float32).reshape(c_out, 1)
        )

    def __call__(self, x):                         # pure-JAX reference path
        return self.weight_2d @ x + self.bias_col


class ReLU:
    def __call__(self, x):
        return jnp.maximum(x, 0.0)


class Tanh:
    def __call__(self, x):
        return jnp.tanh(x)


# ----------------------------------------------------------------------------
# Streamer scaffolding mirroring BaseStream / Elementwise1dStream / create_stream
# ----------------------------------------------------------------------------
class BaseStreamJAX:
    def forward(self, x, final=False):
        raise NotImplementedError

    def __call__(self, x, final=False):
        return self.forward(x, final=final)


class Elementwise1dStreamJAX(BaseStreamJAX):
    """Streamer for pointwise modules (no receptive field, no state)."""

    def __init__(self, net):
        self.net = net

    def forward(self, x, final=False):
        y = self.net(x)
        if y.shape[-1] != x.shape[-1]:
            raise RuntimeError("invalid_elementwise_output")
        return y


_STREAM_MAP = []   # (module_type, streamer_type); empty -> elementwise fallback


def create_stream(net):
    for module, streamer in _STREAM_MAP:
        if isinstance(net, module):
            return streamer(net)
    return Elementwise1dStreamJAX(net)


# ----------------------------------------------------------------------------
# Fused Pallas kernel: apply the whole elementwise chain to one (C, T_TILE) tile
# ----------------------------------------------------------------------------
def _build_fused_kernel(layer_kinds):
    def kernel(*refs):
        x_ref, out_ref = refs[0], refs[-1]
        param_refs = refs[1:-1]
        h = x_ref[...]                       # (C_in, T_TILE) f32, lane-dense over T
        p = 0
        for kind in layer_kinds:
            if kind == "conv":
                w = param_refs[p][...]
                b = param_refs[p + 1][...]
                p += 2
                c_in = w.shape[1]
                if c_in <= _VPU_CIN_MAX:
                    # Tiny contraction depth: unrolled broadcast-FMA on the VPU
                    # (avoids MXU push/pop latency for a depth-4 contraction).
                    acc = w[:, 0:1] * h[0:1, :]
                    for ci in range(1, c_in):
                        acc = acc + w[:, ci:ci + 1] * h[ci:ci + 1, :]
                    h = acc + b
                else:
                    h = jnp.dot(w, h, preferred_element_type=jnp.float32) + b
            elif kind == "relu":
                h = jnp.maximum(h, 0.0)
            elif kind == "tanh":
                h = jnp.tanh(h)
            else:                            # pragma: no cover
                raise NotImplementedError(kind)
        out_ref[...] = h                     # output is f32; no redundant cast

    return kernel


class Sequential1dStreamJAX(BaseStreamJAX):
    """Streamer for a Sequential of 1-D elementwise / pointwise layers.

    Mirrors torchstreamer.Sequential1dStream: children are wrapped with
    create_stream().  Because every recognized child is elementwise in time, the
    whole chain is fused into one Pallas kernel per chunk; the per-layer streams
    remain as the unfused fallback path.
    """

    def __init__(self, layers, t_tile=_LANE_TILE):
        self.streams = [create_stream(m) for m in layers]   # structural mirror / fallback
        self._t_tile = int(t_tile)

        kinds, params = [], []
        fused = True
        for m in layers:
            if isinstance(m, PointwiseConv1d):
                kinds.append("conv")
                params.append((m.weight_2d, m.bias_col))
            elif isinstance(m, ReLU):
                kinds.append("relu")
            elif isinstance(m, Tanh):
                kinds.append("tanh")
            else:
                # TODO(synk): children with a temporal receptive field (Conv1d k>1,
                # ConvTranspose1d, ...) need their own stateful streamers.
                fused = False
                break

        self._fused = fused
        if fused:
            self._kinds = tuple(kinds)
            self._params = tuple(params)
            self._kernel = _build_fused_kernel(self._kinds)
            self._jit_forward = jax.jit(self._pallas_forward)

    # ---- fused Pallas path ---------------------------------------------------
    def _pallas_forward(self, x, *flat_params):
        c_in, t = x.shape
        t_tile = self._t_tile
        t_pad = max(pl.cdiv(t, t_tile), 1) * t_tile
        if t_pad != t:
            # Elementwise in time -> zero-padded tail columns never contaminate
            # real outputs; they are sliced off below.
            x = jnp.pad(x, ((0, 0), (0, t_pad - t)))

        convs = [(flat_params[2 * i], flat_params[2 * i + 1])
                 for i in range(len(flat_params) // 2)]

        in_specs = [pl.BlockSpec((c_in, t_tile), lambda i: (0, i))]
        args = [x]
        c_cur = c_in
        flops = 0
        transcendentals = 0
        param_bytes = 0
        conv_idx = 0
        for kind in self._kinds:
            if kind == "conv":
                w, b = convs[conv_idx]
                conv_idx += 1
                # Weights/bias stay resident across T tiles (index_map -> (0, 0)).
                in_specs.append(pl.BlockSpec(w.shape, lambda i: (0, 0)))
                in_specs.append(pl.BlockSpec(b.shape, lambda i: (0, 0)))
                args += [w, b]
                flops += 2 * w.shape[0] * w.shape[1] * t_pad
                param_bytes += 4 * (w.size + b.size)
                c_cur = w.shape[0]
            elif kind == "tanh":
                transcendentals += c_cur * t_pad

        cost = pl.CostEstimate(
            flops=int(flops),
            transcendentals=int(transcendentals),
            bytes_accessed=int(4 * (c_in + c_cur) * t_pad + param_bytes),
        )

        y = pl.pallas_call(
            self._kernel,
            out_shape=jax.ShapeDtypeStruct((c_cur, t_pad), jnp.float32),
            grid=(t_pad // t_tile,),
            in_specs=in_specs,
            out_specs=pl.BlockSpec((c_cur, t_tile), lambda i: (0, i)),
            compiler_params=pltpu.CompilerParams(
                dimension_semantics=("parallel",)),   # megacore / v7x dual-TC
            cost_estimate=cost,
        )(*args)
        return y[:, :t] if t_pad != t else y

    # ---- public streaming API --------------------------------------------------
    def forward(self, x, final=False):
        if x is None:
            return None
        if self._fused:
            flat = []
            for w, b in self._params:
                flat += [w, b]
            y = self._jit_forward(x, *flat)
            if y.shape[-1] != x.shape[-1]:
                raise RuntimeError("invalid_elementwise_output")
            return y
        # Unfused fallback: mirror the original per-layer stream loop.
        y = x
        for stream in self.streams:
            if y is not None:
                y = stream(y, final=final)
        return y


# ----------------------------------------------------------------------------
# Self-test
# ----------------------------------------------------------------------------
if __name__ == "__main__":
    # Small shapes consistent with the module's [C, T] streaming convention:
    # nn.Sequential(Conv1d(4, 32, 1), ReLU(), Conv1d(32, 8, 1)) streamed in chunks.
    C_IN, C_HID, C_OUT = 4, 32, 8
    CHUNKS = (256, 256, 64)     # lane-dense chunks + a short final chunk (pad path)

    key = jax.random.PRNGKey(0)
    k1, k2, k3, k4, kx = jax.random.split(key, 5)
    w1 = jax.random.normal(k1, (C_HID, C_IN, 1), jnp.float32) * 0.5
    b1 = jax.random.normal(k2, (C_HID,), jnp.float32) * 0.1
    w2 = jax.random.normal(k3, (C_OUT, C_HID, 1), jnp.float32) * 0.2
    b2 = jax.random.normal(k4, (C_OUT,), jnp.float32) * 0.1
    x_full = jax.random.normal(kx, (C_IN, sum(CHUNKS)), jnp.float32)

    layers = [PointwiseConv1d(w1, b1), ReLU(), PointwiseConv1d(w2, b2)]
    stream = Sequential1dStreamJAX(layers)

    outputs, off = [], 0
    for i, t_chunk in enumerate(CHUNKS):
        x_chunk = x_full[:, off:off + t_chunk]
        off += t_chunk
        y = stream.forward(x_chunk, final=(i == len(CHUNKS) - 1))
        if y is not None:
            outputs.append(y)
    y_stream = jax.block_until_ready(jnp.concatenate(outputs, axis=-1))

    # Pure-JAX reference over the full (non-streamed) signal.
    y_ref = x_full
    for m in layers:
        y_ref = m(y_ref)
    y_ref = jax.block_until_ready(y_ref)

    assert y_stream.shape == y_ref.shape, (y_stream.shape, y_ref.shape)
    max_err = float(jnp.max(jnp.abs(y_stream - y_ref)))
    assert jnp.allclose(y_stream, y_ref, atol=1e-5, rtol=1e-5), max_err
    print("KERNEL_OK")
</pallas_src>

<mosaic_0001>
module attributes {stable_mosaic.version = 11 : i64} {
  func.func @kernel(%arg0: i32, %arg1: memref<4x128xf32, #tpu.memory_space<vmem>>, %arg2: memref<32x4xf32, #tpu.memory_space<vmem>>, %arg3: memref<32x1xf32, #tpu.memory_space<vmem>>, %arg4: memref<8x32xf32, #tpu.memory_space<vmem>>, %arg5: memref<8x1xf32, #tpu.memory_space<vmem>>, %arg6: memref<8x128xf32, #tpu.memory_space<vmem>>) attributes {dimension_semantics = [#tpu.dimension_semantics<parallel>], iteration_bounds = array<i64: 2>, scalar_prefetch = 0 : i64, scratch_operands = 0 : i64, tpu.core_type = #tpu.core_type<tc>, window_params = [{transform_indices = @transform_0, window_bounds = array<i64: 4, 128>}, {pipeline_mode = #tpu.pipeline_mode<synchronous>, transform_indices = @transform_1, window_bounds = array<i64: 32, 4>}, {pipeline_mode = #tpu.pipeline_mode<synchronous>, transform_indices = @transform_2, window_bounds = array<i64: 32, 1>}, {pipeline_mode = #tpu.pipeline_mode<synchronous>, transform_indices = @transform_3, window_bounds = array<i64: 8, 32>}, {pipeline_mode = #tpu.pipeline_mode<synchronous>, transform_indices = @transform_4, window_bounds = array<i64: 8, 1>}, {transform_indices = @transform_5, window_bounds = array<i64: 8, 128>}]} {
    %c0 = arith.constant 0 : index
    %c0_0 = arith.constant 0 : index
    %0 = vector.load %arg1[%c0, %c0_0] : memref<4x128xf32, #tpu.memory_space<vmem>>, vector<4x128xf32>
    %c0_1 = arith.constant 0 : index
    %c0_2 = arith.constant 0 : index
    %1 = vector.load %arg2[%c0_1, %c0_2] : memref<32x4xf32, #tpu.memory_space<vmem>>, vector<32x4xf32>
    %c0_3 = arith.constant 0 : index
    %c0_4 = arith.constant 0 : index
    %2 = vector.load %arg3[%c0_3, %c0_4] : memref<32x1xf32, #tpu.memory_space<vmem>>, vector<32x1xf32>
    %3 = vector.extract_strided_slice %1 {offsets = [0, 0], sizes = [32, 1], strides = [1, 1]} : vector<32x4xf32> to vector<32x1xf32>
    %4 = vector.extract_strided_slice %0 {offsets = [0, 0], sizes = [1, 128], strides = [1, 1]} : vector<4x128xf32> to vector<1x128xf32>
    %5 = vector.broadcast %3 : vector<32x1xf32> to vector<32x128xf32>
    %6 = vector.broadcast %4 : vector<1x128xf32> to vector<32x128xf32>
    %7 = arith.mulf %5, %6 : vector<32x128xf32>
    %8 = vector.extract_strided_slice %1 {offsets = [0, 1], sizes = [32, 1], strides = [1, 1]} : vector<32x4xf32> to vector<32x1xf32>
    %9 = vector.extract_strided_slice %0 {offsets = [1, 0], sizes = [1, 128], strides = [1, 1]} : vector<4x128xf32> to vector<1x128xf32>
    %10 = vector.broadcast %8 : vector<32x1xf32> to vector<32x128xf32>
    %11 = vector.broadcast %9 : vector<1x128xf32> to vector<32x128xf32>
    %12 = arith.mulf %10, %11 : vector<32x128xf32>
    %13 = arith.addf %7, %12 : vector<32x128xf32>
    %14 = vector.extract_strided_slice %1 {offsets = [0, 2], sizes = [32, 1], strides = [1, 1]} : vector<32x4xf32> to vector<32x1xf32>
    %15 = vector.extract_strided_slice %0 {offsets = [2, 0], sizes = [1, 128], strides = [1, 1]} : vector<4x128xf32> to vector<1x128xf32>
    %16 = vector.broadcast %14 : vector<32x1xf32> to vector<32x128xf32>
    %17 = vector.broadcast %15 : vector<1x128xf32> to vector<32x128xf32>
    %18 = arith.mulf %16, %17 : vector<32x128xf32>
    %19 = arith.addf %13, %18 : vector<32x128xf32>
    %20 = vector.extract_strided_slice %1 {offsets = [0, 3], sizes = [32, 1], strides = [1, 1]} : vector<32x4xf32> to vector<32x1xf32>
    %21 = vector.extract_strided_slice %0 {offsets = [3, 0], sizes = [1, 128], strides = [1, 1]} : vector<4x128xf32> to vector<1x128xf32>
    %22 = vector.broadcast %20 : vector<32x1xf32> to vector<32x128xf32>
    %23 = vector.broadcast %21 : vector<1x128xf32> to vector<32x128xf32>
    %24 = arith.mulf %22, %23 : vector<32x128xf32>
    %25 = arith.addf %19, %24 : vector<32x128xf32>
    %26 = vector.broadcast %2 : vector<32x1xf32> to vector<32x128xf32>
    %27 = arith.addf %25, %26 : vector<32x128xf32>
    %cst = arith.constant 0.000000e+00 : f32
    %28 = vector.broadcast %cst : f32 to vector<32x128xf32>
    %29 = arith.maximumf %27, %28 : vector<32x128xf32>
    %c0_5 = arith.constant 0 : index
    %c0_6 = arith.constant 0 : index
    %30 = vector.load %arg4[%c0_5, %c0_6] : memref<8x32xf32, #tpu.memory_space<vmem>>, vector<8x32xf32>
    %c0_7 = arith.constant 0 : index
    %c0_8 = arith.constant 0 : index
    %31 = vector.load %arg5[%c0_7, %c0_8] : memref<8x1xf32, #tpu.memory_space<vmem>>, vector<8x1xf32>
    %cst_9 = arith.constant dense<0.000000e+00> : vector<8x128xf32>
    %32 = tpu.matmul %30, %29, %cst_9 {dimension_numbers = #tpu.dot_dimension_numbers<[1], [0], [0], [1], [0, 0, 1, 1], [], []>} : vector<8x32xf32>, vector<32x128xf32>, vector<8x128xf32> -> vector<8x128xf32>
    %33 = vector.broadcast %31 : vector<8x1xf32> to vector<8x128xf32>
    %34 = arith.addf %32, %33 : vector<8x128xf32>
    %c0_10 = arith.constant 0 : index
    %c0_11 = arith.constant 0 : index
    %35 = vector.load %arg6[%c0_10, %c0_11] : memref<8x128xf32, #tpu.memory_space<vmem>>, vector<8x128xf32>
    tpu.vector_store %arg6[%c0_10, %c0_11], %34 {strides = array<i32>} : memref<8x128xf32, #tpu.memory_space<vmem>>, vector<8x128xf32>,
    return
  }
  func.func @transform_0(%arg0: i32) -> (i32, i32) {
    %c0_i32 = arith.constant 0 : i32
    %c0_i32_0 = arith.constant 0 : i32
    return %c0_i32, %arg0 : i32, i32
  }
  func.func @transform_1(%arg0: i32) -> (i32, i32) {
    %c0_i32 = arith.constant 0 : i32
    %c0_i32_0 = arith.constant 0 : i32
    %c0_i32_1 = arith.constant 0 : i32
    return %c0_i32, %c0_i32_0 : i32, i32
  }
  func.func @transform_2(%arg0: i32) -> (i32, i32) {
    %c0_i32 = arith.constant 0 : i32
    %c0_i32_0 = arith.constant 0 : i32
    %c0_i32_1 = arith.constant 0 : i32
    return %c0_i32, %c0_i32_0 : i32, i32
  }
  func.func @transform_3(%arg0: i32) -> (i32, i32) {
    %c0_i32 = arith.constant 0 : i32
    %c0_i32_0 = arith.constant 0 : i32
    %c0_i32_1 = arith.constant 0 : i32
    return %c0_i32, %c0_i32_0 : i32, i32
  }
  func.func @transform_4(%arg0: i32) -> (i32, i32) {
    %c0_i32 = arith.constant 0 : i32
    %c0_i32_0 = arith.constant 0 : i32
    %c0_i32_1 = arith.constant 0 : i32
    return %c0_i32, %c0_i32_0 : i32, i32
  }
  func.func @transform_5(%arg0: i32) -> (i32, i32) {
    %c0_i32 = arith.constant 0 : i32
    %c0_i32_0 = arith.constant 0 : i32
    return %c0_i32, %arg0 : i32, i32
  }
}

</mosaic_0001>

<llo_original>
// kernel: _pallas_forward.1
$region0: #{_pallas_forward.1}
  #allocation0 [shape = 'u32[]', space=smem, size = 0x4, offset = 0x4, fixed_abs, tag = 'smem constant byte address 0x4 - core index']
  #allocation1 [shape = 'u32[144,128]{1,0:T(1,128)}', space=vmem, size = 0x12000, scoped, tag = 'internal scratch']
  %s0 = inlined_call_operand.vmem [shape: f32[4,256], index: 0, kind: input, shape index: {}]
  %s1 = inlined_call_operand.vmem [shape: f32[32,4], index: 1, kind: input, shape index: {}]
  %s2 = inlined_call_operand.vmem [shape: f32[32,1], index: 2, kind: input, shape index: {}]
  %s3 = inlined_call_operand.vmem [shape: f32[8,32], index: 3, kind: input, shape index: {}]
  %s4 = inlined_call_operand.vmem [shape: f32[8,1], index: 4, kind: input, shape index: {}]
  %s5 = inlined_call_operand.hbm [shape: f32[8,256], index: 5, kind: output, shape index: {}]
  %s6 = sld [smem:[#allocation0]]
  $region53: #{_pallas_forward.1} parent=0
    _
  %s8 = ssub.s32 1, %s6
  %s9 = scalar_select 0, %s8, %s6
  $region1: #{_pallas_forward.1} parent=0
    #allocation2 [shape = 'u8[8192]{0}', space=vmem, size = 0x2000, scoped, tag = 'output window, operand 0']
    #allocation3 [shape = 's32[2]{0}', space=sflag, size = 0x8, scoped, tag = 'scoped memory for _pallas_forward.1']
    %10 = vsyncpa [#allocation3], 0
    %s11 = scalar_lea.sflag [#allocation3], 1
    %12 = vsyncpa %s11, 0
    loop: start=0, step=1, limit=4
    $region2: #{_pallas_forward.1} parent=1 // loop_pre_header
      _
    $region3: #{_pallas_forward.1} parent=1 // loop_header
      %s14 = sphi 0, %s18
      %p15 = scmp.ge.s32.totalorder %s14, 4
      %s24 = sphi 0, %s26
      %s27 = sphi 0, %s24
      %s28 = sphi 0, %s27
      %s44 = sphi 0, %s28
      %s48 = sphi 0, %s48
      %s50 = sphi 0, %s48
      %s51 = sphi 0, %s50
      %s65 = sphi 0, %s51
      %s69 = sphi 0, %s69
      %s71 = sphi 0, %s69
      %s72 = sphi 0, %s71
      %s86 = sphi 0, %s72
      %s90 = sphi 0, %s90
      %s92 = sphi 0, %s90
      %s93 = sphi 0, %s92
      %s107 = sphi 0, %s93
      %s111 = sphi 0, %s111
      %s113 = sphi 0, %s111
      %s114 = sphi 0, %s113
      %s128 = sphi 0, %s114
      %s134 = sphi 0, %s136
      %s137 = sphi 0, %s134
      %s138 = sphi 0, %s137
      %s154 = sphi 0, %s138
    $region4: #{_pallas_forward.1} parent=1 // loop_header_branch
      %17 = sbr.rel (%p15) target = $region8
    $region5: #{_pallas_forward.1} parent=1 // loop_body
      %s19 = ssub.s32 %s14, 1
      %s20 = ssub.s32 %s14, 2
      %s21 = sadd.s32 %s14, 1
      %s22 = ssub.s32 %s14, %s21
      %p23 = scmp.eq.s32.totalorder %s22, 0
      %s25 = sadd.s32 %s24, 1
      %s26 = scalar_select %p23, %s24, %s25
      %p29 = pneg %p23
      %p30 = scmp.eq.s32.totalorder %s14, 1
      %p31 = por %p29, %p30
      %p32 = scmp.ne.s32.totalorder %s24, %s27
      %p33 = scmp.eq.s32.totalorder %s14, 0
      %p34 = por %p32, %p33
      %p35 = scmp.ne.s32.totalorder %s24, %s27
      %p36 = scmp.eq.s32.totalorder %s19, 1
      %p37 = por %p35, %p36
      %p38 = scmp.ne.s32.totalorder %s27, %s28
      %p39 = scmp.eq.s32.totalorder %s19, 0
      %p40 = por %p38, %p39
      %p41 = scmp.ne.s32.totalorder %s27, %s28
      %p42 = scmp.eq.s32.totalorder %s20, 1
      %p43 = por %p41, %p42
      %p45 = scmp.ne.s32.totalorder %s28, %s44
      %p46 = scmp.eq.s32.totalorder %s20, 0
      %p47 = por %p45, %p46
      %s49 = sadd.s32 %s48, 1
      %p52 = scmp.eq.s32.totalorder %s14, 1
      %p53 = scmp.ne.s32.totalorder %s48, %s50
      %p54 = scmp.eq.s32.totalorder %s14, 0
      %p55 = por %p53, %p54
      %p56 = scmp.ne.s32.totalorder %s48, %s50
      %p57 = scmp.eq.s32.totalorder %s19, 1
      %p58 = por %p56, %p57
      %p59 = scmp.ne.s32.totalorder %s50, %s51
      %p60 = scmp.eq.s32.totalorder %s19, 0
      %p61 = por %p59, %p60
      %p62 = scmp.ne.s32.totalorder %s50, %s51
      %p63 = scmp.eq.s32.totalorder %s20, 1
      %p64 = por %p62, %p63
      %p66 = scmp.ne.s32.totalorder %s51, %s65
      %p67 = scmp.eq.s32.totalorder %s20, 0
      %p68 = por %p66, %p67
      %s70 = sadd.s32 %s69, 1
      %p73 = scmp.eq.s32.totalorder %s14, 1
      %p74 = scmp.ne.s32.totalorder %s69, %s71
      %p75 = scmp.eq.s32.totalorder %s14, 0
      %p76 = por %p74, %p75
      %p77 = scmp.ne.s32.totalorder %s69, %s71
      %p78 = scmp.eq.s32.totalorder %s19, 1
      %p79 = por %p77, %p78
      %p80 = scmp.ne.s32.totalorder %s71, %s72
      %p81 = scmp.eq.s32.totalorder %s19, 0
      %p82 = por %p80, %p81
      %p83 = scmp.ne.s32.totalorder %s71, %s72
      %p84 = scmp.eq.s32.totalorder %s20, 1
      %p85 = por %p83, %p84
      %p87 = scmp.ne.s32.totalorder %s72, %s86
      %p88 = scmp.eq.s32.totalorder %s20, 0
      %p89 = por %p87, %p88
      %s91 = sadd.s32 %s90, 1
      %p94 = scmp.eq.s32.totalorder %s14, 1
      %p95 = scmp.ne.s32.totalorder %s90, %s92
      %p96 = scmp.eq.s32.totalorder %s14, 0
      %p97 = por %p95, %p96
      %p98 = scmp.ne.s32.totalorder %s90, %s92
      %p99 = scmp.eq.s32.totalorder %s19, 1
      %p100 = por %p98, %p99
      %p101 = scmp.ne.s32.totalorder %s92, %s93
      %p102 = scmp.eq.s32.totalorder %s19, 0
      %p103 = por %p101, %p102
      %p104 = scmp.ne.s32.totalorder %s92, %s93
      %p105 = scmp.eq.s32.totalorder %s20, 1
      %p106 = por %p104, %p105
      %p108 = scmp.ne.s32.totalorder %s93, %s107
      %p109 = scmp.eq.s32.totalorder %s20, 0
      %p110 = por %p108, %p109
      %s112 = sadd.s32 %s111, 1
      %p115 = scmp.eq.s32.totalorder %s14, 1
      %p116 = scmp.ne.s32.totalorder %s111, %s113
      %p117 = scmp.eq.s32.totalorder %s14, 0
      %p118 = por %p116, %p117
      %p119 = scmp.ne.s32.totalorder %s111, %s113
      %p120 = scmp.eq.s32.totalorder %s19, 1
      %p121 = por %p119, %p120
      %p122 = scmp.ne.s32.totalorder %s113, %s114
      %p123 = scmp.eq.s32.totalorder %s19, 0
      %p124 = por %p122, %p123
      %p125 = scmp.ne.s32.totalorder %s113, %s114
      %p126 = scmp.eq.s32.totalorder %s20, 1
      %p127 = por %p125, %p126
      %p129 = scmp.ne.s32.totalorder %s114, %s128
      %p130 = scmp.eq.s32.totalorder %s20, 0
      %p131 = por %p129, %p130
      %s132 = ssub.s32 %s14, %s21
      %p133 = scmp.eq.s32.totalorder %s132, 0
      %s135 = sadd.s32 %s134, 1
      %s136 = scalar_select %p133, %s134, %s135
      %p139 = pneg %p133
      %p140 = scmp.eq.s32.totalorder %s14, 1
      %p141 = por %p139, %p140
      %p142 = scmp.ne.s32.totalorder %s134, %s137
      %p143 = scmp.eq.s32.totalorder %s14, 0
      %p144 = por %p142, %p143
      %p145 = scmp.ne.s32.totalorder %s134, %s137
      %p146 = scmp.eq.s32.totalorder %s19, 1
      %p147 = por %p145, %p146
      %p148 = scmp.ne.s32.totalorder %s137, %s138
      %p149 = scmp.eq.s32.totalorder %s19, 0
      %p150 = por %p148, %p149
      %p151 = scmp.ne.s32.totalorder %s137, %s138
      %p152 = scmp.eq.s32.totalorder %s20, 1
      %p153 = por %p151, %p152
      %p155 = scmp.ne.s32.totalorder %s138, %s154
      %p156 = scmp.eq.s32.totalorder %s20, 0
      %p157 = por %p155, %p156
      %p158 = scmp.le.s32.totalorder 1, %s14
      %p159 = scmp.lt.s32.totalorder %s14, 3
      %p160 = pnand %p158, %p159
      %p161 = pneg %p160
      // Predicated region
      $region9: #{_pallas_forward.1} parent=5 // pred_check
        _
      $region10: #{_pallas_forward.1} parent=5 // pred_check_branch
        %163 = sbr.rel (%p160) target = $region12
      $region11: #{_pallas_forward.1} parent=5 // pred_region
        %s164 = ssub.s32 %s14, 1
        // Predicated region
        $region13: #{_pallas_forward.1} parent=11 // pred_check
          %p165 = pneg %p61
        $region14: #{_pallas_forward.1} parent=11 // pred_check_branch
          %167 = sbr.rel (%p165) target = $region16
        $region15: #{_pallas_forward.1} parent=11 // pred_region
          _
        $region16: #{_pallas_forward.1} parent=11 // pred_fallthru
          _
        // Predicated region
        $region17: #{_pallas_forward.1} parent=11 // pred_check
          %p168 = pneg %p82
        $region18: #{_pallas_forward.1} parent=11 // pred_check_branch
          %170 = sbr.rel (%p168) target = $region20
        $region19: #{_pallas_forward.1} parent=11 // pred_region
          _
        $region20: #{_pallas_forward.1} parent=11 // pred_fallthru
          _
        // Predicated region
        $region21: #{_pallas_forward.1} parent=11 // pred_check
          %p171 = pneg %p103
        $region22: #{_pallas_forward.1} parent=11 // pred_check_branch
          %173 = sbr.rel (%p171) target = $region24
        $region23: #{_pallas_forward.1} parent=11 // pred_region
          _
        $region24: #{_pallas_forward.1} parent=11 // pred_fallthru
          _
        // Predicated region
        $region25: #{_pallas_forward.1} parent=11 // pred_check
          %p174 = pneg %p124
        $region26: #{_pallas_forward.1} parent=11 // pred_check_branch
          %176 = sbr.rel (%p174) target = $region28
        $region27: #{_pallas_forward.1} parent=11 // pred_region
          _
        $region28: #{_pallas_forward.1} parent=11 // pred_fallthru
          _
      $region12: #{_pallas_forward.1} parent=5 // pred_fallthru
        _
      %p177 = scmp.lt.s32.totalorder %s14, 2
      // Predicated region
      $region29: #{_pallas_forward.1} parent=5 // pred_check
        %p178 = pneg %p177
      $region30: #{_pallas_forward.1} parent=5 // pred_check_branch
        %180 = sbr.rel (%p178) target = $region32
      $region31: #{_pallas_forward.1} parent=5 // pred_region
        // Predicated region
        $region33: #{_pallas_forward.1} parent=31 // pred_check
          %p181 = pneg %p34
        $region34: #{_pallas_forward.1} parent=31 // pred_check_branch
          %183 = sbr.rel (%p181) target = $region36
        $region35: #{_pallas_forward.1} parent=31 // pred_region
          %p184 = scmp.lt.s32.totalorder %s14, 1
          %s185 = scalar_select %p184, %s14, 1
          %s186 = smul.addr %s185, 4
          %s187 = scalar_lea.vmem %s0, %s186
        $region36: #{_pallas_forward.1} parent=31 // pred_fallthru
          _
      $region32: #{_pallas_forward.1} parent=5 // pred_fallthru
        _
      %p188 = scmp.le.s32.totalorder 1, %s14
      %p189 = scmp.lt.s32.totalorder %s14, 3
      %p190 = pnand %p188, %p189
      %p191 = pneg %p190
      // Predicated region
      $region37: #{_pallas_forward.1} parent=5 // pred_check
        _
      $region38: #{_pallas_forward.1} parent=5 // pred_check_branch
        %193 = sbr.rel (%p190) target = $region40
      $region39: #{_pallas_forward.1} parent=5 // pred_region
        %s194 = ssub.s32 %s14, 1
        %p195 = scmp.lt.s32.totalorder %s19, 1
        %s196 = scalar_select %p195, %s19, 1
        %s197 = smul.addr %s196, 4
        %s198 = scalar_lea.vmem %s0, %s197
        %p199 = pneg %p40
        %p200 = pneg %p37
        %p201 = pneg %p61
        %p202 = pneg %p58
        %p203 = pneg %p82
        %p204 = pneg %p79
        %p205 = pneg %p103
        %p206 = pneg %p100
        %p207 = pneg %p124
        %p208 = pneg %p121
        %p209 = pneg %p150
        %p210 = pneg %p147
        %s211 = sand.u32 %s137, 1
        %s212 = scalar_lea.sflag [#allocation3], %s211
        %s213 = sand.u32 %s137, 1
        %s214 = smul.addr %s213, 8
        %s215 = scalar_lea.vmem [#allocation2], %s214
        %p216 = scmp.lt.s32.totalorder %s19, 1
        %s217 = scalar_select %p216, %s19, 1
        %s218 = smul.addr %s217, 4
        %s219 = scalar_lea.vmem %s0, %s218
        %v220 = vld [vmem:[%s219] sm:$0xf]
        %v221 = vld [vmem:[%s1] sm:$0xff]
        %v222 = vld [vmem:[%s1 + $0x8] sm:$0xff]
        %v223 = vld [vmem:[%s1 + $0x10] sm:$0xff]
        %v224 = vld [vmem:[%s1 + $0x18] sm:$0xff]
        %v225 = vld [vmem:[%s2] sm:$0xff]
        %v226 = vld [vmem:[%s2 + $0x8] sm:$0xff]
        %v227 = vld [vmem:[%s2 + $0x10] sm:$0xff]
        %v228 = vld [vmem:[%s2 + $0x18] sm:$0xff]
        %230 = vset.pattern.permute.xlu0 0
        %231 = vperm.xlu0 %230, %v221
        %v232 = vpop.permute.xlu0 %231
        %235 = vset.pattern.permute.xlu0 0
        %236 = vperm.xlu0 %235, %v222
        %v237 = vpop.permute.xlu0 %236
        %240 = vset.pattern.permute.xlu0 0
        %241 = vperm.xlu0 %240, %v223
        %v242 = vpop.permute.xlu0 %241
        %245 = vset.pattern.permute.xlu0 0
        %246 = vperm.xlu0 %245, %v224
        %v247 = vpop.permute.xlu0 %246
        %v249 = vlaneseq
        %v250 = vshrl.u32 %v249, 7
        %v251 = vsub.s32 0, %v250
        %v252 = vrot.slane %v220, %v251
        %v253 = vmul.f32 %v232, %v252
        %v254 = vmul.f32 %v237, %v252
        %v255 = vmul.f32 %v242, %v252
        %v256 = vmul.f32 %v247, %v252
        %257 = vset.pattern.permute.xlu0 1
        %258 = vperm.xlu0 %257, %v221
        %v259 = vpop.permute.xlu0 %258
        %261 = vset.pattern.permute.xlu0 1
        %262 = vperm.xlu0 %261, %v222
        %v263 = vpop.permute.xlu0 %262
        %265 = vset.pattern.permute.xlu0 1
        %266 = vperm.xlu0 %265, %v223
        %v267 = vpop.permute.xlu0 %266
        %269 = vset.pattern.permute.xlu0 1
        %270 = vperm.xlu0 %269, %v224
        %v271 = vpop.permute.xlu0 %270
        %v273 = vlaneseq
        %v274 = vshrl.u32 %v273, 7
        %v275 = vsub.s32 1, %v274
        %v276 = vrot.slane %v220, %v275
        %v277 = vmul.f32 %v259, %v276
        %v278 = vmul.f32 %v263, %v276
        %v279 = vmul.f32 %v267, %v276
        %v280 = vmul.f32 %v271, %v276
        %v281 = vadd.f32 %v253, %v277
        %v282 = vadd.f32 %v254, %v278
        %v283 = vadd.f32 %v255, %v279
        %v284 = vadd.f32 %v256, %v280
        %285 = vset.pattern.permute.xlu0 2
        %286 = vperm.xlu0 %285, %v221
        %v287 = vpop.permute.xlu0 %286
        %289 = vset.pattern.permute.xlu0 2
        %290 = vperm.xlu0 %289, %v222
        %v291 = vpop.permute.xlu0 %290
        %293 = vset.pattern.permute.xlu0 2
        %294 = vperm.xlu0 %293, %v223
        %v295 = vpop.permute.xlu0 %294
        %297 = vset.pattern.permute.xlu0 2
        %298 = vperm.xlu0 %297, %v224
        %v299 = vpop.permute.xlu0 %298
        %v301 = vlaneseq
        %v302 = vshrl.u32 %v301, 7
        %v303 = vsub.s32 2, %v302
        %v304 = vrot.slane %v220, %v303
        %v305 = vmul.f32 %v287, %v304
        %v306 = vmul.f32 %v291, %v304
        %v307 = vmul.f32 %v295, %v304
        %v308 = vmul.f32 %v299, %v304
        %v309 = vadd.f32 %v281, %v305
        %v310 = vadd.f32 %v282, %v306
        %v311 = vadd.f32 %v283, %v307
        %v312 = vadd.f32 %v284, %v308
        %313 = vset.pattern.permute.xlu0 3
        %314 = vperm.xlu0 %313, %v221
        %v315 = vpop.permute.xlu0 %314
        %317 = vset.pattern.permute.xlu0 3
        %318 = vperm.xlu0 %317, %v222
        %v319 = vpop.permute.xlu0 %318
        %321 = vset.pattern.permute.xlu0 3
        %322 = vperm.xlu0 %321, %v223
        %v323 = vpop.permute.xlu0 %322
        %325 = vset.pattern.permute.xlu0 3
        %326 = vperm.xlu0 %325, %v224
        %v327 = vpop.permute.xlu0 %326
        %v329 = vlaneseq
        %v330 = vshrl.u32 %v329, 7
        %v331 = vsub.s32 3, %v330
        %v332 = vrot.slane %v220, %v331
        %v333 = vmul.f32 %v315, %v332
        %v334 = vmul.f32 %v319, %v332
        %v335 = vmul.f32 %v323, %v332
        %v336 = vmul.f32 %v327, %v332
        %v337 = vadd.f32 %v309, %v333
        %v338 = vadd.f32 %v310, %v334
        %v339 = vadd.f32 %v311, %v335
        %v340 = vadd.f32 %v312, %v336
        %342 = vset.pattern.permute.xlu0 0
        %343 = vperm.xlu0 %342, %v225
        %v344 = vpop.permute.xlu0 %343
        %347 = vset.pattern.permute.xlu0 0
        %348 = vperm.xlu0 %347, %v226
        %v349 = vpop.permute.xlu0 %348
        %352 = vset.pattern.permute.xlu0 0
        %353 = vperm.xlu0 %352, %v227
        %v354 = vpop.permute.xlu0 %353
        %357 = vset.pattern.permute.xlu0 0
        %358 = vperm.xlu0 %357, %v228
        %v359 = vpop.permute.xlu0 %358
        %v361 = vadd.f32 %v337, %v344
        %v362 = vadd.f32 %v338, %v349
        %v363 = vadd.f32 %v339, %v354
        %v364 = vadd.f32 %v340, %v359
        %v365 = vmax.f32 %v361, 0.0
        %v366 = vmax.f32 %v362, 0.0
        %v367 = vmax.f32 %v363, 0.0
        %v368 = vmax.f32 %v364, 0.0
        %v369 = vld [vmem:[%s3] sm:$0xff]
        %v370 = vld [vmem:[%s4] sm:$0xff]
        %372 = vset.pattern.permute.xlu0 0
        %373 = vperm.xlu0 %372, %v370
        %v374 = vpop.permute.xlu0 %373
        %vm376 = vcmask 261120
        %v378 = vsel %vm376, %v369, 0
        %380 = vmatprep.subr.mxu0 0.0
        %381 = vmatpush1.msra.mxu0 %v365
        %382 = vmatprep.subr.mxu0 0.0
        %383 = vmatpush1.msra.mxu0 %v366
        %384 = vmatprep.subr.mxu0 0.0
        %385 = vmatpush1.msra.mxu0 %v367
        %386 = vmatprep.subr.mxu0 0.0
        %387 = vmatpush1.msra.mxu0 %v368
        %388 = vmatprep.subr.mxu0 0.0
        %389 = vmatpush1.msra.mxu0 0.0
        %390 = vmatprep.subr.mxu0 0.0
        %391 = vmatpush1.msra.mxu0 0.0
        %392 = vmatprep.subr.mxu0 0.0
        %393 = vmatpush1.msra.mxu0 0.0
        %394 = vmatprep.subr.mxu0 0.0
        %395 = vmatpush1.msra.mxu0 0.0
        %396 = vmatprep.subr.mxu0 0.0
        %397 = vmatpush1.msra.mxu0 0.0
        %398 = vmatprep.subr.mxu0 0.0
        %399 = vmatpush1.msra.mxu0 0.0
        %400 = vmatprep.subr.mxu0 0.0
        %401 = vmatpush1.msra.mxu0 0.0
        %402 = vmatprep.subr.mxu0 0.0
        %403 = vmatpush1.msra.mxu0 0.0
        %404 = vmatprep.subr.mxu0 0.0
        %405 = vmatpush1.msra.mxu0 0.0
        %406 = vmatprep.subr.mxu0 0.0
        %407 = vmatpush1.msra.mxu0 0.0
        %408 = vmatprep.subr.mxu0 0.0
        %409 = vmatpush1.msra.mxu0 0.0
        %410 = vmatprep.subr.mxu0 0.0
        %411 = vmatpush1.msra.mxu0 0.0
        %412 = vmatprep.subr.mxu0 0.0
        %413 = vmatpush1.msra.mxu0 0.0
        %414 = vmatprep.subr.mxu0 0.0
        %415 = vmatpush1.msra.mxu0 0.0
        %416 = vmatprep.subr.mxu0 0.0
        %417 = vmatpush1.msra.mxu0 0.0
        %418 = vmatprep.subr.mxu0 0.0
        %419 = vmatpush1.msra.mxu0 0.0
        %420 = vmatprep.subr.mxu0 0.0
        %421 = vmatpush1.msra.mxu0 0.0
        %422 = vmatprep.subr.mxu0 0.0
        %423 = vmatpush1.msra.mxu0 0.0
        %424 = vmatprep.subr.mxu0 0.0
        %425 = vmatpush1.msra.mxu0 0.0
        %426 = vmatprep.subr.mxu0 0.0
        %427 = vmatpush1.msra.mxu0 0.0
        %428 = vmatprep.subr.mxu0 0.0
        %429 = vmatpush1.msra.mxu0 0.0
        %430 = vmatprep.subr.mxu0 0.0
        %431 = vmatpush1.msra.mxu0 0.0
        %432 = vmatprep.subr.mxu0 0.0
        %433 = vmatpush1.msra.mxu0 0.0
        %434 = vmatprep.subr.mxu0 0.0
        %435 = vmatpush1.msra.mxu0 0.0
        %436 = vmatprep.subr.mxu0 0.0
        %437 = vmatpush1.msra.mxu0 0.0
        %438 = vmatprep.subr.mxu0 0.0
        %439 = vmatpush1.msra.mxu0 0.0
        %440 = vmatprep.subr.mxu0 0.0
        %441 = vmatpush1.msra.mxu0 0.0
        %442 = vmatprep.subr.mxu0 0.0
        %443 = vmatpush1.msra.mxu0 0.0
        %444 = vmatprep.mubr.f32.mxu0 0.0
        %445 = vmatmul.mubr.f32.gmra.mrb[0].mxu0 %v378
        %v446 = vpop.f32.mrb[0].mxu0
        %v447 = vadd.f32 %v374, %v446
        %v448 = vpop.f32.mrb[0].mxu0
        %449 = vdwg.mxu0
        %450 = vst [vmem:[%s215] sm:$0xff] %v447
        %s451 = sand.u32 %s137, 1
        %s452 = scalar_lea.sflag [#allocation3], %s451
        %s453 = sand.u32 %s137, 1
        %s454 = smul.addr %s453, 8
        %s455 = scalar_lea.vmem [#allocation2], %s454
        // Predicated region
        $region41: #{_pallas_forward.1} parent=39 // pred_check
          %p456 = pneg %p147
        $region42: #{_pallas_forward.1} parent=39 // pred_check_branch
          %458 = sbr.rel (%p456) target = $region44
        $region43: #{_pallas_forward.1} parent=39 // pred_region
          %s460 = ssub.s32 128, 128
          %461 = vsyncadd %s452, %s460
          %s462 = smul.addr %s19, 128
          %s463 = scalar_lea.hbm %s5, %s462
          %s465 = sshll.u32 %s455, 4
          %s466 = int_to_ptr.vmem [resolvable:$true] %s465
          %468 = dma.vmem_to_hbm [thread:$0]  %s466, 128, %s463, %s452
        $region44: #{_pallas_forward.1} parent=39 // pred_fallthru
          _
      $region40: #{_pallas_forward.1} parent=5 // pred_fallthru
        _
      %p469 = scmp.le.s32.totalorder 2, %s14
      // Predicated region
      $region45: #{_pallas_forward.1} parent=5 // pred_check
        %p470 = pneg %p469
      $region46: #{_pallas_forward.1} parent=5 // pred_check_branch
        %472 = sbr.rel (%p470) target = $region48
      $region47: #{_pallas_forward.1} parent=5 // pred_region
        %s473 = ssub.s32 %s14, 2
        // Predicated region
        $region49: #{_pallas_forward.1} parent=47 // pred_check
          %p474 = pneg %p153
        $region50: #{_pallas_forward.1} parent=47 // pred_check_branch
          %476 = sbr.rel (%p474) target = $region52
        $region51: #{_pallas_forward.1} parent=47 // pred_region
          %s477 = sand.u32 %s138, 1
          %s478 = scalar_lea.sflag [#allocation3], %s477
          %s479 = sand.u32 %s138, 1
          %s480 = smul.addr %s479, 8
          %s481 = scalar_lea.vmem [#allocation2], %s480
          %482 = dma.done %s478, 128
        $region52: #{_pallas_forward.1} parent=47 // pred_fallthru
          _
      $region48: #{_pallas_forward.1} parent=5 // pred_fallthru
        _
    $region6: #{_pallas_forward.1} parent=1 // loop_footer
      %s18 = sadd.s32 1, %s14
    $region7: #{_pallas_forward.1} parent=1 // loop_footer_branch
      %13 = sbr.rel target = $region3
    $region8: #{_pallas_forward.1} parent=1 // loop_exit
      _
    %483 = vsyncpa [#allocation3], 1
    %s484 = scalar_lea.sflag [#allocation3], 1
    %485 = vsyncpa %s484, 1

</llo_original>
